<compile_context>
chip_gen: v7x
topology: tpu7x:2x2x1
jax: 0.10.0
libtpu: 0.0.40
codegen_flags: <defaults>
</compile_context>

<pallas_src>
import functools

import jax
import jax.numpy as jnp
from jax import lax
from jax.experimental import pallas as pl
from jax.experimental.pallas import tpu as pltpu

_NEG_BIG = -1e30  # finite "minus infinity" for masking / state init


def _round_up(x, m):
    return (x + m - 1) // m * m


def _cdiv(a, b):
    return -(-a // b)


def _simple_queue_loss_kernel(*refs, block_b, block_k, k_valid, inv_temperature,
                              ce_factor, has_order, needs_mask, compute_dtype):
    if has_order:
        (zis_ref, zjs_ref, qT_ref, order_ref, out_ref,
         z2_sc, pos_sc, m_sc, l_sc) = refs
    else:
        (zis_ref, zjs_ref, qT_ref, out_ref,
         z2_sc, pos_sc, m_sc, l_sc) = refs
        order_ref = None

    k = pl.program_id(1)
    nk = pl.num_programs(1)
    bb = block_b

    # ---- once per B tile: positive term + cached scaled/cast stacked LHS ---
    @pl.when(k == 0)
    def _init():
        zis = zis_ref[...]                                    # (bb, D) f32
        zjs = zjs_ref[...]                                    # (bb, D) f32
        pos_sc[...] = (jnp.sum(zis * zjs, axis=1, keepdims=True)
                       * inv_temperature)
        z2 = jnp.concatenate([zis, zjs], axis=0) * inv_temperature
        z2_sc[...] = z2.astype(compute_dtype)                 # (2*bb, D)
        m_sc[...] = jnp.full(m_sc.shape, _NEG_BIG, jnp.float32)
        l_sc[...] = jnp.zeros(l_sc.shape, jnp.float32)

    # ---- fused negatives: one (2*bb, D) x (D, bk) MXU matmul ---------------
    neg = jnp.dot(z2_sc[...], qT_ref[...],
                  preferred_element_type=jnp.float32)         # (2*bb, bk) f32
    if has_order:
        neg = neg + order_ref[...]                            # (1, bk) broadcast
    if needs_mask:
        col = k * block_k + lax.broadcasted_iota(jnp.int32, neg.shape, 1)
        neg = jnp.where(col < k_valid, neg, _NEG_BIG)

    # ---- streaming logsumexp over the full stacked tile (no slicing) -------
    m_prev = m_sc[...]
    m_new = jnp.maximum(m_prev, jnp.max(neg, axis=1, keepdims=True))
    l_sc[...] = (jnp.exp(m_prev - m_new) * l_sc[...]
                 + jnp.sum(jnp.exp(neg - m_new), axis=1, keepdims=True))
    m_sc[...] = m_new

    # ---- finalize: combine zis/zjs halves with pos, lane-dense store -------
    @pl.when(k == nk - 1)
    def _finalize():
        pos = pos_sc[...]                                     # (bb, 1)
        m2 = m_sc[...]
        l2 = l_sc[...]
        m_i, m_j = m2[:bb], m2[bb:]
        l_i, l_j = l2[:bb], l2[bb:]
        m_all = jnp.maximum(pos, jnp.maximum(m_i, m_j))
        denom = (jnp.exp(pos - m_all)
                 + l_i * jnp.exp(m_i - m_all)
                 + l_j * jnp.exp(m_j - m_all))
        lse = m_all + jnp.log(denom)
        per_row = ce_factor * lse - pos                       # (bb, 1)
        out_ref[...] = jnp.broadcast_to(per_row, out_ref.shape)


def _vmem_footprint(bb, bk, D, q_itemsize, has_order):
    """Conservative VMEM bytes: double-buffered tiles + scratch + the
    materialized (2*bb, bk) f32 matmul output and exp temporaries."""
    f = 2 * D * bk * q_itemsize                  # queue.T tile (double-buffered)
    f += 2 * 2 * bb * D * 4                      # zis + zjs tiles (double-buffered)
    if has_order:
        f += 2 * 8 * bk * 4                      # order tile, sublane-padded
    f += 2 * bb * 128 * 4                        # output tile (double-buffered)
    f += 2 * bb * D * q_itemsize                 # cached LHS scratch
    f += 5 * bb * 128 * 4                        # (bb,1)/(2*bb,1) scratch, lane-padded
    f += 3 * 2 * bb * bk * 4                     # neg / exp f32 temporaries
    return f


def _choose_block_k(K, D, bb, q_itemsize, has_order, budget_bytes, max_bk=2048):
    """Pick a 128-aligned K tile <= max_bk whose full footprint fits the
    budget while minimizing pad columns; never falls back to the whole queue."""
    nk = max(1, _cdiv(K, max_bk))
    while True:
        bk = _round_up(_cdiv(K, nk), 128)
        if bk <= max_bk and _vmem_footprint(bb, bk, D, q_itemsize,
                                            has_order) <= budget_bytes:
            return bk
        if bk <= 128:
            return 128
        nk += 1


def simple_queue_loss(zis, zjs, queue, order=None, *, temperature,
                      ce_factor=1.0, compute_dtype=jnp.bfloat16,
                      block_k=None, interpret=False):
    """ce_factor=1.0 -> plain CrossEntropyLoss; ce_factor<1.0 -> 'DeCE'.
    order=None specializes away the (identically zero) order term.
    compute_dtype controls the queue-stream / MXU dtype (bf16 default for
    HBM bandwidth; pass jnp.float32 for exact f32 numerics)."""
    B, D = zis.shape
    K, Dq = queue.shape
    assert Dq == D and zjs.shape == (B, D)

    zis = jnp.asarray(zis, jnp.float32)
    zjs = jnp.asarray(zjs, jnp.float32)
    has_order = order is not None
    if has_order:
        order = jnp.asarray(order, jnp.float32).reshape(1, K)

    # ---- generation-aware VMEM budgets (v5e/v6e 128 MiB, v7x 64 MiB) -------
    phys_vmem = 64 << 20                         # conservative default (v7x)
    try:
        info = pltpu.get_tpu_info()
        phys_vmem = int(getattr(info, "vmem_capacity_bytes", phys_vmem)) or phys_vmem
    except Exception:
        pass
    tile_budget = min(int(phys_vmem * 0.40), 48 << 20)
    vmem_cap = min(int(phys_vmem * 0.85), 100 << 20)

    # ---- B tiling: multiple of 8, >= 2 B tiles when possible (megacore),
    #      bb up to 256 so each queue stream is amortized over 2*bb MXU rows --
    nb_target = max(2, _cdiv(B, 256))
    bb = max(8, min(256, _round_up(_cdiv(B, nb_target), 8)))
    B_pad = _round_up(B, bb)
    nb = B_pad // bb
    if B_pad != B:
        zis = jnp.pad(zis, ((0, B_pad - B), (0, 0)))
        zjs = jnp.pad(zjs, ((0, B_pad - B), (0, 0)))

    # ---- K tiling (streamed reduction axis, pad + in-kernel mask) ----------
    q_itemsize = jnp.dtype(compute_dtype).itemsize
    if block_k is None:
        block_k = _choose_block_k(K, D, bb, q_itemsize, has_order, tile_budget)
    else:
        block_k = _round_up(block_k, 128)
    K_pad = _round_up(K, block_k)
    nk = K_pad // block_k
    needs_mask = K_pad != K

    # Queue streamed transposed (D, K_pad): lane dim = K (lane-dense even for
    # small D), cast once to the compute dtype in the wrapper.
    queue_t = jnp.asarray(queue, jnp.float32).T.astype(compute_dtype)
    if needs_mask:
        queue_t = jnp.pad(queue_t, ((0, 0), (0, K_pad - K)))
        if has_order:
            order = jnp.pad(order, ((0, 0), (0, K_pad - K)))

    kernel = functools.partial(
        _simple_queue_loss_kernel,
        block_b=bb, block_k=block_k, k_valid=K,
        inv_temperature=float(1.0 / temperature),
        ce_factor=float(ce_factor),
        has_order=has_order, needs_mask=needs_mask,
        compute_dtype=compute_dtype)

    in_specs = [
        pl.BlockSpec((bb, D), lambda b, k: (b, 0)),           # zis (k-invariant)
        pl.BlockSpec((bb, D), lambda b, k: (b, 0)),           # zjs (k-invariant)
        pl.BlockSpec((D, block_k), lambda b, k: (0, k)),      # queue.T tile
    ]
    args = [zis, zjs, queue_t]
    if has_order:
        in_specs.append(pl.BlockSpec((1, block_k), lambda b, k: (0, k)))
        args.append(order)

    out_spec = pl.BlockSpec((bb, 128), lambda b, k: (b, 0))   # k-invariant
    out_shape = jax.ShapeDtypeStruct((B_pad, 128), jnp.float32)

    scratch_shapes = [
        pltpu.VMEM((2 * bb, D), compute_dtype),  # cached scaled stacked LHS
        pltpu.VMEM((bb, 1), jnp.float32),        # positive logits
        pltpu.VMEM((2 * bb, 1), jnp.float32),    # running max (zis & zjs rows)
        pltpu.VMEM((2 * bb, 1), jnp.float32),    # running denom
    ]

    est = _vmem_footprint(bb, block_k, D, q_itemsize, has_order)
    vmem_limit = int(min(max(int(est * 1.5) + (4 << 20), 16 << 20), vmem_cap))

    out = pl.pallas_call(
        kernel,
        out_shape=out_shape,
        grid_spec=pltpu.PrefetchScalarGridSpec(
            num_scalar_prefetch=0,
            grid=(nb, nk),                        # reduction (K) axis last
            in_specs=in_specs,
            out_specs=out_spec,
            scratch_shapes=scratch_shapes),
        compiler_params=pltpu.CompilerParams(
            dimension_semantics=("parallel", "arbitrary"),
            vmem_limit_bytes=vmem_limit),
        interpret=interpret,
    )(*args)

    # Lane-dense per-row partial losses -> scalar mean over the real rows.
    return jnp.mean(out[:B, 0])


def _reference_loss(zis, zjs, queue, order, temperature, ce_factor=1.0):
    pos = jnp.sum(zis * zjs, axis=1, keepdims=True) / temperature
    negi = zis @ queue.T / temperature
    negj = zjs @ queue.T / temperature
    if order is not None:
        negi = negi + order
        negj = negj + order
    sim = jnp.concatenate([pos, negi, negj], axis=1)
    lse = jax.nn.logsumexp(sim, axis=1)
    return jnp.mean(ce_factor * lse - sim[:, 0])


if __name__ == "__main__":
    # Small shapes consistent with the module's forward.
    B, D, K = 8, 32, 128          # batch, embedding dim, queue size
    temperature = 0.07

    key = jax.random.PRNGKey(0)
    k1, k2, k3 = jax.random.split(key, 3)
    zis = jax.random.normal(k1, (B, D), dtype=jnp.float32)
    zjs = jax.random.normal(k2, (B, D), dtype=jnp.float32)
    queue = jax.random.normal(k3, (K, D), dtype=jnp.float32)   # TensorQueue state

    # Case 1: module defaults (alpha=1.0 -> ln_alpha=0 -> order term exactly
    # zero) => specialized order-free kernel, plain CE, exact f32 queue stream.
    ref = _reference_loss(zis, zjs, queue, None, temperature)
    loss_f32 = jax.block_until_ready(
        simple_queue_loss(zis, zjs, queue, None, temperature=temperature,
                          compute_dtype=jnp.float32))
    assert jnp.allclose(loss_f32, ref, rtol=1e-4, atol=1e-4), (
        float(loss_f32), float(ref))

    # Case 2: default bf16 queue stream (half HBM bytes; f32 exp/log path).
    loss_bf16 = jax.block_until_ready(
        simple_queue_loss(zis, zjs, queue, None, temperature=temperature))
    assert jnp.allclose(loss_bf16, ref, rtol=5e-2, atol=5e-1), (
        float(loss_bf16), float(ref))

    # Case 3: non-trivial order (alpha<1) + DeCE factor exercises the full path.
    # TODO(synk): exact TensorQueue.get_order block ordering not available; a
    # synthetic block-age ramp of the same shape is used here.
    eff_bs = B                                  # world_size = 1
    n_blocks = K // (2 * eff_bs)
    ln_alpha = jnp.log(jnp.float32(0.9))
    order = jnp.broadcast_to(
        (jnp.arange(n_blocks, dtype=jnp.float32) * ln_alpha)[:, None],
        (n_blocks, 2 * eff_bs)).reshape(-1)     # (K,)
    ref_dece = _reference_loss(zis, zjs, queue, order, temperature,
                               ce_factor=0.9)
    loss_dece = jax.block_until_ready(
        simple_queue_loss(zis, zjs, queue, order, temperature=temperature,
                          ce_factor=0.9, compute_dtype=jnp.float32))
    assert jnp.allclose(loss_dece, ref_dece, rtol=1e-4, atol=1e-4), (
        float(loss_dece), float(ref_dece))

    # Case 4: ragged shapes (B not a multiple of 8, K not a multiple of 128)
    # exercise the B-pad + K-pad + in-kernel column-mask path.
    B2, K2 = 10, 200
    k4, k5, k6 = jax.random.split(jax.random.PRNGKey(1), 3)
    zis2 = jax.random.normal(k4, (B2, D), dtype=jnp.float32)
    zjs2 = jax.random.normal(k5, (B2, D), dtype=jnp.float32)
    queue2 = jax.random.normal(k6, (K2, D), dtype=jnp.float32)
    ref2 = _reference_loss(zis2, zjs2, queue2, None, temperature)
    loss2 = jax.block_until_ready(
        simple_queue_loss(zis2, zjs2, queue2, None, temperature=temperature,
                          compute_dtype=jnp.float32))
    assert jnp.allclose(loss2, ref2, rtol=1e-4, atol=1e-4), (
        float(loss2), float(ref2))

    # TODO(synk): queue update (en_de_queue of concat_all_gather(zis/zjs)), the
    # iter counter, alpha schedule and debug logging/accuracy are stateful side
    # effects outside the loss math and are not implemented in the kernel.
    print("KERNEL_OK")
</pallas_src>

<mosaic_0001>
module attributes {stable_mosaic.version = 11 : i64} {
  func.func @_simple_queue_loss_kernel(%arg0: i32, %arg1: i32, %arg2: memref<8x32xf32, #tpu.memory_space<vmem>>, %arg3: memref<8x32xf32, #tpu.memory_space<vmem>>, %arg4: memref<32x128xf32, #tpu.memory_space<vmem>>, %arg5: memref<8x128xf32, #tpu.memory_space<vmem>>, %arg6: memref<16x32xf32, #tpu.memory_space<vmem>>, %arg7: memref<8x1xf32, #tpu.memory_space<vmem>>, %arg8: memref<16x1xf32, #tpu.memory_space<vmem>>, %arg9: memref<16x1xf32, #tpu.memory_space<vmem>>) attributes {dimension_semantics = [#tpu.dimension_semantics<parallel>, #tpu.dimension_semantics<arbitrary>], iteration_bounds = array<i64: 1, 1>, scalar_prefetch = 0 : i64, scratch_operands = 4 : i64, tpu.core_type = #tpu.core_type<tc>, window_params = [{transform_indices = @transform_0, window_bounds = array<i64: 8, 32>}, {transform_indices = @transform_1, window_bounds = array<i64: 8, 32>}, {transform_indices = @transform_2, window_bounds = array<i64: 32, 128>}, {transform_indices = @transform_3, window_bounds = array<i64: 8, 128>}]} {
    %c0_i32 = arith.constant 0 : i32
    %0 = arith.cmpi eq, %arg1, %c0_i32 : i32
    %1 = arith.extui %0 : i1 to i32
    %c0_i32_0 = arith.constant 0 : i32
    %2 = arith.cmpi ne, %1, %c0_i32_0 : i32
    scf.if %2 {
      %c0_16 = arith.constant 0 : index
      %c0_17 = arith.constant 0 : index
      %25 = vector.load %arg2[%c0_16, %c0_17] : memref<8x32xf32, #tpu.memory_space<vmem>>, vector<8x32xf32>
      %c0_18 = arith.constant 0 : index
      %c0_19 = arith.constant 0 : index
      %26 = vector.load %arg3[%c0_18, %c0_19] : memref<8x32xf32, #tpu.memory_space<vmem>>, vector<8x32xf32>
      %27 = arith.mulf %25, %26 : vector<8x32xf32>
      %cst_20 = arith.constant dense<0.000000e+00> : vector<8xf32>
      %28 = vector.multi_reduction <add>, %27, %cst_20 [1] : vector<8x32xf32> to vector<8xf32>
      %29 = vector.shape_cast %28 : vector<8xf32> to vector<8x1xf32>
      %cst_21 = arith.constant 14.2857141 : f32
      %30 = vector.broadcast %cst_21 : f32 to vector<8x1xf32>
      %31 = arith.mulf %29, %30 : vector<8x1xf32>
      %c0_22 = arith.constant 0 : index
      %c0_23 = arith.constant 0 : index
      %32 = vector.load %arg7[%c0_22, %c0_23] : memref<8x1xf32, #tpu.memory_space<vmem>>, vector<8x1xf32>
      tpu.vector_store %arg7[%c0_22, %c0_23], %31 {strides = array<i32>} : memref<8x1xf32, #tpu.memory_space<vmem>>, vector<8x1xf32>,
      %33 = tpu.concatenate %25, %26 in 0 : vector<8x32xf32>, vector<8x32xf32> -> vector<16x32xf32>
      %cst_24 = arith.constant 14.2857141 : f32
      %34 = vector.broadcast %cst_24 : f32 to vector<16x32xf32>
      %35 = arith.mulf %33, %34 : vector<16x32xf32>
      %c0_25 = arith.constant 0 : index
      %c0_26 = arith.constant 0 : index
      %36 = vector.load %arg6[%c0_25, %c0_26] : memref<16x32xf32, #tpu.memory_space<vmem>>, vector<16x32xf32>
      tpu.vector_store %arg6[%c0_25, %c0_26], %35 {strides = array<i32>} : memref<16x32xf32, #tpu.memory_space<vmem>>, vector<16x32xf32>,
      %cst_27 = arith.constant -1.000000e+30 : f32
      %37 = vector.broadcast %cst_27 : f32 to vector<16x1xf32>
      %c0_28 = arith.constant 0 : index
      %c0_29 = arith.constant 0 : index
      %38 = vector.load %arg8[%c0_28, %c0_29] : memref<16x1xf32, #tpu.memory_space<vmem>>, vector<16x1xf32>
      tpu.vector_store %arg8[%c0_28, %c0_29], %37 {strides = array<i32>} : memref<16x1xf32, #tpu.memory_space<vmem>>, vector<16x1xf32>,
      %cst_30 = arith.constant 0.000000e+00 : f32
      %39 = vector.broadcast %cst_30 : f32 to vector<16x1xf32>
      %c0_31 = arith.constant 0 : index
      %c0_32 = arith.constant 0 : index
      %40 = vector.load %arg9[%c0_31, %c0_32] : memref<16x1xf32, #tpu.memory_space<vmem>>, vector<16x1xf32>
      tpu.vector_store %arg9[%c0_31, %c0_32], %39 {strides = array<i32>} : memref<16x1xf32, #tpu.memory_space<vmem>>, vector<16x1xf32>,
    } else {
    }
    %c0 = arith.constant 0 : index
    %c0_1 = arith.constant 0 : index
    %3 = vector.load %arg6[%c0, %c0_1] : memref<16x32xf32, #tpu.memory_space<vmem>>, vector<16x32xf32>
    %c0_2 = arith.constant 0 : index
    %c0_3 = arith.constant 0 : index
    %4 = vector.load %arg4[%c0_2, %c0_3] : memref<32x128xf32, #tpu.memory_space<vmem>>, vector<32x128xf32>
    %cst = arith.constant dense<0.000000e+00> : vector<16x128xf32>
    %5 = tpu.matmul %3, %4, %cst {dimension_numbers = #tpu.dot_dimension_numbers<[1], [0], [0], [1], [0, 0, 1, 1], [], []>} : vector<16x32xf32>, vector<32x128xf32>, vector<16x128xf32> -> vector<16x128xf32>
    %c0_4 = arith.constant 0 : index
    %c0_5 = arith.constant 0 : index
    %6 = vector.load %arg8[%c0_4, %c0_5] : memref<16x1xf32, #tpu.memory_space<vmem>>, vector<16x1xf32>
    %cst_6 = arith.constant dense<0xFF800000> : vector<16xf32>
    %7 = vector.multi_reduction <maximumf>, %5, %cst_6 [1] : vector<16x128xf32> to vector<16xf32>
    %8 = vector.shape_cast %7 : vector<16xf32> to vector<16x1xf32>
    %9 = arith.maximumf %6, %8 : vector<16x1xf32>
    %10 = arith.subf %6, %9 : vector<16x1xf32>
    %11 = math.exp %10 : vector<16x1xf32>
    %c0_7 = arith.constant 0 : index
    %c0_8 = arith.constant 0 : index
    %12 = vector.load %arg9[%c0_7, %c0_8] : memref<16x1xf32, #tpu.memory_space<vmem>>, vector<16x1xf32>
    %13 = arith.mulf %11, %12 : vector<16x1xf32>
    %14 = vector.broadcast %9 : vector<16x1xf32> to vector<16x128xf32>
    %15 = arith.subf %5, %14 : vector<16x128xf32>
    %16 = math.exp %15 : vector<16x128xf32>
    %cst_9 = arith.constant dense<0.000000e+00> : vector<16xf32>
    %17 = vector.multi_reduction <add>, %16, %cst_9 [1] : vector<16x128xf32> to vector<16xf32>
    %18 = vector.shape_cast %17 : vector<16xf32> to vector<16x1xf32>
    %19 = arith.addf %13, %18 : vector<16x1xf32>
    %c0_10 = arith.constant 0 : index
    %c0_11 = arith.constant 0 : index
    %20 = vector.load %arg9[%c0_10, %c0_11] : memref<16x1xf32, #tpu.memory_space<vmem>>, vector<16x1xf32>
    tpu.vector_store %arg9[%c0_10, %c0_11], %19 {strides = array<i32>} : memref<16x1xf32, #tpu.memory_space<vmem>>, vector<16x1xf32>,
    %c0_12 = arith.constant 0 : index
    %c0_13 = arith.constant 0 : index
    %21 = vector.load %arg8[%c0_12, %c0_13] : memref<16x1xf32, #tpu.memory_space<vmem>>, vector<16x1xf32>
    tpu.vector_store %arg8[%c0_12, %c0_13], %9 {strides = array<i32>} : memref<16x1xf32, #tpu.memory_space<vmem>>, vector<16x1xf32>,
    %c0_i32_14 = arith.constant 0 : i32
    %22 = arith.cmpi eq, %arg1, %c0_i32_14 : i32
    %23 = arith.extui %22 : i1 to i32
    %c0_i32_15 = arith.constant 0 : i32
    %24 = arith.cmpi ne, %23, %c0_i32_15 : i32
    scf.if %24 {
      %c0_16 = arith.constant 0 : index
      %c0_17 = arith.constant 0 : index
      %25 = vector.load %arg7[%c0_16, %c0_17] : memref<8x1xf32, #tpu.memory_space<vmem>>, vector<8x1xf32>
      %c0_18 = arith.constant 0 : index
      %c0_19 = arith.constant 0 : index
      %26 = vector.load %arg8[%c0_18, %c0_19] : memref<16x1xf32, #tpu.memory_space<vmem>>, vector<16x1xf32>
      %c0_20 = arith.constant 0 : index
      %c0_21 = arith.constant 0 : index
      %27 = vector.load %arg9[%c0_20, %c0_21] : memref<16x1xf32, #tpu.memory_space<vmem>>, vector<16x1xf32>
      %28 = vector.extract_strided_slice %26 {offsets = [0, 0], sizes = [8, 1], strides = [1, 1]} : vector<16x1xf32> to vector<8x1xf32>
      %29 = vector.extract_strided_slice %26 {offsets = [8, 0], sizes = [8, 1], strides = [1, 1]} : vector<16x1xf32> to vector<8x1xf32>
      %30 = vector.extract_strided_slice %27 {offsets = [0, 0], sizes = [8, 1], strides = [1, 1]} : vector<16x1xf32> to vector<8x1xf32>
      %31 = vector.extract_strided_slice %27 {offsets = [8, 0], sizes = [8, 1], strides = [1, 1]} : vector<16x1xf32> to vector<8x1xf32>
      %32 = arith.maximumf %28, %29 : vector<8x1xf32>
      %33 = arith.maximumf %25, %32 : vector<8x1xf32>
      %34 = arith.subf %25, %33 : vector<8x1xf32>
      %35 = math.exp %34 : vector<8x1xf32>
      %36 = arith.subf %28, %33 : vector<8x1xf32>
      %37 = math.exp %36 : vector<8x1xf32>
      %38 = arith.mulf %30, %37 : vector<8x1xf32>
      %39 = arith.addf %35, %38 : vector<8x1xf32>
      %40 = arith.subf %29, %33 : vector<8x1xf32>
      %41 = math.exp %40 : vector<8x1xf32>
      %42 = arith.mulf %31, %41 : vector<8x1xf32>
      %43 = arith.addf %39, %42 : vector<8x1xf32>
      %44 = math.log %43 : vector<8x1xf32>
      %45 = arith.addf %33, %44 : vector<8x1xf32>
      %cst_22 = arith.constant 1.000000e+00 : f32
      %46 = vector.broadcast %cst_22 : f32 to vector<8x1xf32>
      %47 = arith.mulf %46, %45 : vector<8x1xf32>
      %48 = arith.subf %47, %25 : vector<8x1xf32>
      %49 = vector.shape_cast %48 : vector<8x1xf32> to vector<8x1xf32>
      %50 = vector.broadcast %49 : vector<8x1xf32> to vector<8x128xf32>
      %c0_23 = arith.constant 0 : index
      %c0_24 = arith.constant 0 : index
      %51 = vector.load %arg5[%c0_23, %c0_24] : memref<8x128xf32, #tpu.memory_space<vmem>>, vector<8x128xf32>
      tpu.vector_store %arg5[%c0_23, %c0_24], %50 {strides = array<i32>} : memref<8x128xf32, #tpu.memory_space<vmem>>, vector<8x128xf32>,
    } else {
    }
    return
  }
  func.func @transform_0(%arg0: i32, %arg1: i32) -> (i32, i32) {
    %c0_i32 = arith.constant 0 : i32
    %c0_i32_0 = arith.constant 0 : i32
    return %arg0, %c0_i32 : i32, i32
  }
  func.func @transform_1(%arg0: i32, %arg1: i32) -> (i32, i32) {
    %c0_i32 = arith.constant 0 : i32
    %c0_i32_0 = arith.constant 0 : i32
    return %arg0, %c0_i32 : i32, i32
  }
  func.func @transform_2(%arg0: i32, %arg1: i32) -> (i32, i32) {
    %c0_i32 = arith.constant 0 : i32
    %c0_i32_0 = arith.constant 0 : i32
    return %c0_i32, %arg1 : i32, i32
  }
  func.func @transform_3(%arg0: i32, %arg1: i32) -> (i32, i32) {
    %c0_i32 = arith.constant 0 : i32
    %c0_i32_0 = arith.constant 0 : i32
    return %arg0, %c0_i32 : i32, i32
  }
}

</mosaic_0001>

<llo_original>
// kernel: tpu_custom_call.1
$region0: #{tpu_custom_call.1}
  #allocation0 [shape = 'u32[]', space=smem, size = 0x4, offset = 0x4, fixed_abs, tag = 'smem constant byte address 0x4 - core index']
  #allocation1 [shape = 'u32[144,128]{1,0:T(1,128)}', space=vmem, size = 0x12000, scoped, tag = 'internal scratch']
  #allocation2 [shape = 'f32[16,32]{1,0:T(8,128)}', space=vmem, size = 0x2000, scoped, tag = 'scratch operand']
  #allocation3 [shape = 'f32[8,1]{1,0:T(8,128)}', space=vmem, size = 0x1000, scoped, tag = 'scratch operand']
  #allocation4 [shape = 'f32[16,1]{1,0:T(8,128)}', space=vmem, size = 0x2000, scoped, tag = 'scratch operand']
  #allocation5 [shape = 'f32[16,1]{1,0:T(8,128)}', space=vmem, size = 0x2000, scoped, tag = 'scratch operand']
  %s0 = inlined_call_operand.hbm [shape: f32[8,32], index: 0, kind: input, shape index: {}]
  %s1 = inlined_call_operand.hbm [shape: f32[8,32], index: 1, kind: input, shape index: {}]
  %s2 = inlined_call_operand.hbm [shape: f32[32,128], index: 2, kind: input, shape index: {}]
  %s3 = inlined_call_operand.hbm [shape: f32[8,128], index: 3, kind: output, shape index: {}]
  %s4 = sld [smem:[#allocation0]]
  $region42: #{tpu_custom_call.1} parent=0
    _
  %s6 = ssub.s32 1, %s4
  %s7 = scalar_select 0, %s6, %s4
  $region1: #{tpu_custom_call.1} parent=0
    #allocation6 [shape = 'u8[4096]{0}', space=vmem, size = 0x1000, scoped, tag = 'input window, operand 0, single buffered']
    #allocation7 [shape = 's32[1]{0}', space=sflag, size = 0x4, scoped, tag = 'scoped memory for tpu_custom_call.1']
    #allocation8 [shape = 's32[1]{0}', space=sflag, size = 0x4, scoped, tag = 'scoped memory for tpu_custom_call.1']
    #allocation9 [shape = 'u8[4096]{0}', space=vmem, size = 0x1000, scoped, tag = 'input window, operand 1, single buffered']
    #allocation10 [shape = 's32[1]{0}', space=sflag, size = 0x4, scoped, tag = 'scoped memory for tpu_custom_call.1']
    #allocation11 [shape = 'u8[16384]{0}', space=vmem, size = 0x4000, scoped, tag = 'input window, operand 2, single buffered']
    #allocation12 [shape = 'u8[4096]{0}', space=vmem, size = 0x1000, scoped, tag = 'output window, operand 0, single buffered']
    %8 = vsyncpa [#allocation7], 0
    %9 = vsyncpa [#allocation10], 0
    %10 = vsyncpa [#allocation8], 0
    // Predicated region
    $region2: #{tpu_custom_call.1} parent=1 // pred_check
      _
    $region3: #{tpu_custom_call.1} parent=1 // pred_check_branch
      %12 = sbr.rel (0) target = $region5
    $region4: #{tpu_custom_call.1} parent=1 // pred_region
      %s14 = ssub.s32 128, 128
      %15 = vsyncadd [#allocation7], %s14
      %s17 = sshll.u32 [#allocation6], 4
      %s18 = int_to_ptr.vmem [resolvable:$true] %s17
      %20 = dma.hbm_to_vmem [thread:$0]  %s0, 128, %s18, [#allocation7]
    $region5: #{tpu_custom_call.1} parent=1 // pred_fallthru
      _
    // Predicated region
    $region6: #{tpu_custom_call.1} parent=1 // pred_check
      _
    $region7: #{tpu_custom_call.1} parent=1 // pred_check_branch
      %22 = sbr.rel (0) target = $region9
    $region8: #{tpu_custom_call.1} parent=1 // pred_region
      %s24 = ssub.s32 128, 128
      %25 = vsyncadd [#allocation10], %s24
      %s27 = sshll.u32 [#allocation9], 4
      %s28 = int_to_ptr.vmem [resolvable:$true] %s27
      %30 = dma.hbm_to_vmem [thread:$0]  %s1, 128, %s28, [#allocation10]
    $region9: #{tpu_custom_call.1} parent=1 // pred_fallthru
      _
    // Predicated region
    $region10: #{tpu_custom_call.1} parent=1 // pred_check
      _
    $region11: #{tpu_custom_call.1} parent=1 // pred_check_branch
      %32 = sbr.rel (0) target = $region13
    $region12: #{tpu_custom_call.1} parent=1 // pred_region
      %s34 = ssub.s32 512, 512
      %35 = vsyncadd [#allocation10], %s34
      %s36 = sshll.u32 [#allocation11], 4
      %s37 = int_to_ptr.vmem [resolvable:$true] %s36
      %42 = dma.hbm_to_vmem [thread:$0]  %s2, 512, %s37, [#allocation10], 128, 128, 8
    $region13: #{tpu_custom_call.1} parent=1 // pred_fallthru
      _
    // Predicated region
    $region14: #{tpu_custom_call.1} parent=1 // pred_check
      _
    $region15: #{tpu_custom_call.1} parent=1 // pred_check_branch
      %44 = sbr.rel (0) target = $region17
    $region16: #{tpu_custom_call.1} parent=1 // pred_region
      %45 = dma.done [#allocation7], 128
    $region17: #{tpu_custom_call.1} parent=1 // pred_fallthru
      _
    // Predicated region
    $region18: #{tpu_custom_call.1} parent=1 // pred_check
      _
    $region19: #{tpu_custom_call.1} parent=1 // pred_check_branch
      %47 = sbr.rel (0) target = $region21
    $region20: #{tpu_custom_call.1} parent=1 // pred_region
      %48 = dma.done [#allocation10], 128
    $region21: #{tpu_custom_call.1} parent=1 // pred_fallthru
      _
    // Predicated region
    $region22: #{tpu_custom_call.1} parent=1 // pred_check
      _
    $region23: #{tpu_custom_call.1} parent=1 // pred_check_branch
      %50 = sbr.rel (0) target = $region25
    $region24: #{tpu_custom_call.1} parent=1 // pred_region
      %51 = dma.done [#allocation10], 512
    $region25: #{tpu_custom_call.1} parent=1 // pred_fallthru
      _
    %p52 = scmp.eq.s32.totalorder 0, 0
    // Predicated region
    $region26: #{tpu_custom_call.1} parent=1 // pred_check
      %p53 = pneg %p52
    $region27: #{tpu_custom_call.1} parent=1 // pred_check_branch
      %55 = sbr.rel (%p53) target = $region29
    $region28: #{tpu_custom_call.1} parent=1 // pred_region
      %v56 = vld [vmem:[#allocation6] sm:$0xff]
      %v57 = vld [vmem:[#allocation9] sm:$0xff]
      %v58 = vmul.f32 %v56, %v57
      %vm59 = vcmask 261120
      %v60 = vsel %vm59, %v58, 0.0
      %61 = vadd.xlane.f32.xlu0 %v60
      %v62 = vpop.xlane.xlu0 %61
      %v63 = vmul.f32 %v62, 14.285714
      %vm64 = vcmask 7168
      %65 = vst.msk [vmem:[#allocation3] sm:$0xff] %vm64, %v63
      %v66 = vmul.f32 %v56, 14.285714
      %v67 = vmul.f32 %v57, 14.285714
      %68 = vst.msk [vmem:[#allocation2] sm:$0xff] %vm59, %v66
      %69 = vst.msk [vmem:[#allocation2 + $0x8] sm:$0xff] %vm59, %v67
      %70 = vst.msk [vmem:[#allocation4] sm:$0xff] %vm64, -1e+30
      %71 = vst.msk [vmem:[#allocation4 + $0x8] sm:$0xff] %vm64, -1e+30
      %72 = vst.msk [vmem:[#allocation5] sm:$0xff] %vm64, 0.0
      %73 = vst.msk [vmem:[#allocation5 + $0x8] sm:$0xff] %vm64, 0.0
    $region29: #{tpu_custom_call.1} parent=1 // pred_fallthru
      _
    %v74 = vld [vmem:[#allocation2] sm:$0xff]
    %v75 = vld [vmem:[#allocation2 + $0x8] sm:$0xff]
    %v76 = vld [vmem:[#allocation11] sm:$0xff]
    %v77 = vld [vmem:[#allocation11 + $0x8] sm:$0xff]
    %v78 = vld [vmem:[#allocation11 + $0x10] sm:$0xff]
    %v79 = vld [vmem:[#allocation11 + $0x18] sm:$0xff]
    %vm80 = vcmask 261120
    %v82 = vsel %vm80, %v74, 0
    %v85 = vsel %vm80, %v75, 0
    %87 = vmatprep.subr.mxu0 0.0
    %88 = vmatpush1.msra.mxu0 %v76
    %89 = vmatprep.subr.mxu0 0.0
    %90 = vmatpush1.msra.mxu0 %v77
    %91 = vmatprep.subr.mxu0 0.0
    %92 = vmatpush1.msra.mxu0 %v78
    %93 = vmatprep.subr.mxu0 0.0
    %94 = vmatpush1.msra.mxu0 %v79
    %95 = vmatprep.subr.mxu0 0.0
    %96 = vmatpush1.msra.mxu0 0.0
    %97 = vmatprep.subr.mxu0 0.0
    %98 = vmatpush1.msra.mxu0 0.0
    %99 = vmatprep.subr.mxu0 0.0
    %100 = vmatpush1.msra.mxu0 0.0
    %101 = vmatprep.subr.mxu0 0.0
    %102 = vmatpush1.msra.mxu0 0.0
    %103 = vmatprep.subr.mxu0 0.0
    %104 = vmatpush1.msra.mxu0 0.0
    %105 = vmatprep.subr.mxu0 0.0
    %106 = vmatpush1.msra.mxu0 0.0
    %107 = vmatprep.subr.mxu0 0.0
    %108 = vmatpush1.msra.mxu0 0.0
    %109 = vmatprep.subr.mxu0 0.0
    %110 = vmatpush1.msra.mxu0 0.0
    %111 = vmatprep.subr.mxu0 0.0
    %112 = vmatpush1.msra.mxu0 0.0
    %113 = vmatprep.subr.mxu0 0.0
    %114 = vmatpush1.msra.mxu0 0.0
    %115 = vmatprep.subr.mxu0 0.0
    %116 = vmatpush1.msra.mxu0 0.0
    %117 = vmatprep.subr.mxu0 0.0
    %118 = vmatpush1.msra.mxu0 0.0
    %119 = vmatprep.subr.mxu0 0.0
    %120 = vmatpush1.msra.mxu0 0.0
    %121 = vmatprep.subr.mxu0 0.0
    %122 = vmatpush1.msra.mxu0 0.0
    %123 = vmatprep.subr.mxu0 0.0
    %124 = vmatpush1.msra.mxu0 0.0
    %125 = vmatprep.subr.mxu0 0.0
    %126 = vmatpush1.msra.mxu0 0.0
    %127 = vmatprep.subr.mxu0 0.0
    %128 = vmatpush1.msra.mxu0 0.0
    %129 = vmatprep.subr.mxu0 0.0
    %130 = vmatpush1.msra.mxu0 0.0
    %131 = vmatprep.subr.mxu0 0.0
    %132 = vmatpush1.msra.mxu0 0.0
    %133 = vmatprep.subr.mxu0 0.0
    %134 = vmatpush1.msra.mxu0 0.0
    %135 = vmatprep.subr.mxu0 0.0
    %136 = vmatpush1.msra.mxu0 0.0
    %137 = vmatprep.subr.mxu0 0.0
    %138 = vmatpush1.msra.mxu0 0.0
    %139 = vmatprep.subr.mxu0 0.0
    %140 = vmatpush1.msra.mxu0 0.0
    %141 = vmatprep.subr.mxu0 0.0
    %142 = vmatpush1.msra.mxu0 0.0
    %143 = vmatprep.subr.mxu0 0.0
    %144 = vmatpush1.msra.mxu0 0.0
    %145 = vmatprep.subr.mxu0 0.0
    %146 = vmatpush1.msra.mxu0 0.0
    %147 = vmatprep.subr.mxu0 0.0
    %148 = vmatpush1.msra.mxu0 0.0
    %149 = vmatprep.subr.mxu0 0.0
    %150 = vmatpush1.msra.mxu0 0.0
    %151 = vmatprep.mubr.f32.mxu0 0.0
    %152 = vmatmul.mubr.f32.gmra.mrb[0].mxu0 %v82
    %v153 = vpop.f32.mrb[0].mxu0
    %v154 = vadd.f32 0.0, %v153
    %v155 = vpop.f32.mrb[0].mxu0
    %156 = vmatprep.mubr.f32.mxu0 0.0
    %157 = vmatmul.mubr.f32.gmra.mrb[0].mxu0 %v85
    %v158 = vpop.f32.mrb[0].mxu0
    %v159 = vadd.f32 0.0, %v158
    %v160 = vpop.f32.mrb[0].mxu0
    %161 = vdwg.mxu0
    %v162 = vld [vmem:[#allocation4] sm:$0xff]
    %v163 = vld [vmem:[#allocation4 + $0x8] sm:$0xff]
    %164 = vmax.xlane.f32.xlu0 %v154
    %v165 = vpop.xlane.xlu0 %164
    %166 = vmax.xlane.f32.xlu0 %v159
    %v167 = vpop.xlane.xlu0 %166
    %v168 = vmax.f32 %v162, %v165
    %v169 = vmax.f32 %v163, %v167
    %v170 = vsub.f32 %v162, %v168
    %v171 = vsub.f32 %v163, %v169
    %v172 = vmul.f32 %v170, 1.442695
    %v173 = vpow.pop %v172
    %v174 = vmul.f32 %v171, 1.442695
    %v175 = vpow.pop %v174
    %v176 = vld [vmem:[#allocation5] sm:$0xff]
    %v177 = vld [vmem:[#allocation5 + $0x8] sm:$0xff]
    %v178 = vmul.f32 %v173, %v176
    %v179 = vmul.f32 %v175, %v177
    %181 = vset.pattern.permute.xlu0 0
    %182 = vperm.xlu0 %181, %v168
    %v183 = vpop.permute.xlu0 %182
    %186 = vset.pattern.permute.xlu0 0
    %187 = vperm.xlu0 %186, %v169
    %v188 = vpop.permute.xlu0 %187
    %v190 = vsub.f32 %v154, %v183
    %v191 = vsub.f32 %v159, %v188
    %v192 = vmul.f32 %v190, 1.442695
    %v193 = vpow.pop %v192
    %v194 = vmul.f32 %v191, 1.442695
    %v195 = vpow.pop %v194
    %196 = vadd.xlane.f32.xlu0 %v193
    %v197 = vpop.xlane.xlu0 %196
    %198 = vadd.xlane.f32.xlu0 %v195
    %v199 = vpop.xlane.xlu0 %198
    %v200 = vadd.f32 %v178, %v197
    %v201 = vadd.f32 %v179, %v199
    %vm202 = vcmask 7168
    %203 = vst.msk [vmem:[#allocation5] sm:$0xff] %vm202, %v200
    %204 = vst.msk [vmem:[#allocation5 + $0x8] sm:$0xff] %vm202, %v201
    %205 = vst.msk [vmem:[#allocation4] sm:$0xff] %vm202, %v168
    %206 = vst.msk [vmem:[#allocation4 + $0x8] sm:$0xff] %vm202, %v169
    // Predicated region
    $region30: #{tpu_custom_call.1} parent=1 // pred_check
      %p207 = pneg %p52
    $region31: #{tpu_custom_call.1} parent=1 // pred_check_branch
      %209 = sbr.rel (%p207) target = $region33
    $region32: #{tpu_custom_call.1} parent=1 // pred_region
      %v210 = vld [vmem:[#allocation3] sm:$0xff]
      %v211 = vld [vmem:[#allocation4] sm:$0xff]
      %v212 = vld [vmem:[#allocation4 + $0x8] sm:$0xff]
      %v213 = vld [vmem:[#allocation5] sm:$0xff]
      %v214 = vld [vmem:[#allocation5 + $0x8] sm:$0xff]
      %v215 = vmax.f32 %v211, %v212
      %v216 = vmax.f32 %v210, %v215
      %v217 = vsub.f32 %v210, %v216
      %v218 = vmul.f32 %v217, 1.442695
      %v219 = vpow.pop %v218
      %v220 = vsub.f32 %v211, %v216
      %v221 = vmul.f32 %v220, 1.442695
      %v222 = vpow.pop %v221
      %v223 = vmul.f32 %v213, %v222
      %v224 = vadd.f32 %v219, %v223
      %v225 = vsub.f32 %v212, %v216
      %v226 = vmul.f32 %v225, 1.442695
      %v227 = vpow.pop %v226
      %v228 = vmul.f32 %v214, %v227
      %v229 = vadd.f32 %v224, %v228
      %v230 = vlog2.pop %v229
      %v231 = vmul.f32 %v230, 0.6931472
      %v232 = vadd.f32 %v216, %v231
      %v233 = vsub.f32 %v232, %v210
      %235 = vset.pattern.permute.xlu0 0
      %236 = vperm.xlu0 %235, %v233
      %v237 = vpop.permute.xlu0 %236
      %239 = vst [vmem:[#allocation12] sm:$0xff] %v237
    $region33: #{tpu_custom_call.1} parent=1 // pred_fallthru
      _
    // Predicated region
    $region34: #{tpu_custom_call.1} parent=1 // pred_check
      _
    $region35: #{tpu_custom_call.1} parent=1 // pred_check_branch
      %241 = sbr.rel (0) target = $region37
    $region36: #{tpu_custom_call.1} parent=1 // pred_region
      %s243 = ssub.s32 128, 128
      %244 = vsyncadd [#allocation8], %s243
      %s246 = sshll.u32 [#allocation12], 4
      %s247 = int_to_ptr.vmem [resolvable:$true] %s246
      %249 = dma.vmem_to_hbm [thread:$0]  %s247, 128, %s3, [#allocation8]
    $region37: #{tpu_custom_call.1} parent=1 // pred_fallthru
      _
    // Predicated region
    $region38: #{tpu_custom_call.1} parent=1 // pred_check
      _
    $region39: #{tpu_custom_call.1} parent=1 // pred_check_branch
      %251 = sbr.rel (0) target = $region41
    $region40: #{tpu_custom_call.1} parent=1 // pred_region
      %252 = dma.done [#allocation8], 128
    $region41: #{tpu_custom_call.1} parent=1 // pred_fallthru
      _
    %253 = vsyncpa [#allocation7], 1
    %254 = vsyncpa [#allocation10], 1
    %255 = vsyncpa [#allocation8], 1

</llo_original>
